<compile_context>
chip_gen: v6e
topology: v6e:2x2x1
jax: 0.10.0
libtpu: 0.0.40
codegen_flags: <defaults>
</compile_context>

<pallas_src>
import jax
import jax.numpy as jnp
from jax.experimental import pallas as pl
from jax.experimental.pallas import tpu as pltpu

# ----------------------------- configuration --------------------------------
N = 2            # demo batch
NC = 1           # channels
IMG = 8          # spatial size
D = NC * IMG * IMG          # flattened image dim (64)
COND = 10        # cond_label_size
H = 32           # hidden width of coupling s/t nets
L = 4            # number of coupling layers
ALPHA = 1e-6     # dequantization logit alpha

# padded (lane-dense) dims
DP = 128         # D padded to 128 lanes
HP = 64          # per-net hidden padded so that 2*HP = 128 lanes
MAX_TILE_N = 128  # batch tile (sweet spot for vreg pressure per review)


def _round_up(x, m):
    return (x + m - 1) // m * m


# ------------------------------- kernel -------------------------------------
def igan_inverse_kernel(z_ref, w1_ref, b1_ref, w2_ref, b2_ref, x_ref):
    """RealNVP.inverse coupling stack + deq.inverse for one batch tile.

    z_ref  : (TN, DP)        f32   latent (zero-padded features beyond D)
    w1_ref : (L, DP, 2*HP)   bf16  fused [sw1x || tw1x] (zero-padded, resident)
    b1_ref : (L, 1, 2*HP)    f32   fused [sb1 || tb1] with label term pre-folded
    w2_ref : (L, 2*HP, 2*DP) bf16  block-diag [sw2 ; tw2] (zero-padded, resident)
    b2_ref : (L, 1, 2*DP)    f32   fused [sb2 || tb2]
    x_ref  : (TN, DP)        f32   output image (padded features ignored by wrapper)
    """
    u = z_ref[...].astype(jnp.float32)                        # (TN, DP) carry, f32
    tn = u.shape[0]

    # hoisted iotas (compile-time constants; JAX does not CSE broadcast_in_dim)
    feat_parity = jax.lax.broadcasted_iota(jnp.int32, (tn, DP), 1) % 2
    tanh_lane = jax.lax.broadcasted_iota(jnp.int32, (tn, 2 * HP), 1) < HP

    # RealNVP.inverse iterates coupling layers in reverse order.
    for l in reversed(range(L)):
        mask = feat_parity == (l % 2)                         # True = conditioning feats
        # matmul operand slab in bf16 (halves live vreg bytes vs f32)
        mu = jnp.where(mask, u, 0.0).astype(jnp.bfloat16)     # (TN, DP) bf16

        # fused first layer of s-net and t-net; label term already folded into b1
        h1 = jnp.dot(mu, w1_ref[l],
                     preferred_element_type=jnp.float32) + b1_ref[l]   # (TN, 2HP) f32
        # lanes [0, HP): tanh (s-net hidden); lanes [HP, 2HP): relu (t-net hidden)
        h = jnp.where(tanh_lane, jnp.tanh(h1),
                      jnp.maximum(h1, 0.0)).astype(jnp.bfloat16)       # bf16 slab

        # fused (block-diagonal) second layer -> [s || t] of shape (TN, 2*DP)
        st = jnp.dot(h, w2_ref[l],
                     preferred_element_type=jnp.float32) + b2_ref[l]
        s = st[:, :DP]
        t = st[:, DP:]

        # inverse affine coupling: x = m*u + (1-m) * (u*exp(s) + t)
        u = jnp.where(mask, u, u * jnp.exp(s) + t)

    # deq.inverse: inverse logit dequantization (f32 transcendental, safe on all chips)
    x = (jax.nn.sigmoid(u) - ALPHA) / (1.0 - 2.0 * ALPHA)
    x_ref[...] = x.astype(x_ref.dtype)


# ------------------------------- wrapper -------------------------------------
def igan_forward(z, packed, y=None):
    """Equivalent of IGAN.forward(z, y) -> x of shape (N, nc, img, img)."""
    n = z.shape[0]

    # glue: torch does labels = zeros(N, C); labels[:, y] = 1 -> identical columns
    # for EVERY row, so the label conditioning folds into a resident per-layer bias
    # (no per-row HBM stream for labels at all).
    labels = jnp.zeros((1, COND), jnp.float32)
    if y is not None:
        labels = labels.at[:, y].set(1.0)
    b1_eff = packed["b1"] + jnp.einsum("rc,lch->lrh", labels, packed["wy1"])  # (L,1,2HP)

    # batch tiling: pad to sublane multiple, guarantee >=2 tiles when possible
    # (both v7x TensorCores), cap per-tile rows to limit vreg pressure.
    n_pad8 = _round_up(max(n, 1), 8)
    if n_pad8 >= 16:
        tile_n = min(MAX_TILE_N, _round_up((n_pad8 + 1) // 2, 8))
    else:
        tile_n = n_pad8
    n_pad = _round_up(n_pad8, tile_n)
    num_tiles = n_pad // tile_n

    z_pad = jnp.zeros((n_pad, DP), jnp.float32).at[:n, :D].set(z.astype(jnp.float32))

    w1, w2, b2 = packed["w1"], packed["w2"], packed["b2"]

    flops = int(2 * n_pad * L * (DP * 2 * HP + 2 * HP * 2 * DP))
    transcendentals = int(n_pad * (L * (2 * HP + DP) + DP))
    bytes_accessed = int(w1.size * 2 + w2.size * 2 + b1_eff.size * 4 + b2.size * 4
                         + 2 * n_pad * DP * 4)

    x_flat = pl.pallas_call(
        igan_inverse_kernel,
        out_shape=jax.ShapeDtypeStruct((n_pad, DP), jnp.float32),
        grid=(num_tiles,),
        in_specs=[
            pl.BlockSpec((tile_n, DP), lambda i: (i, 0)),             # z (streamed)
            pl.BlockSpec((L, DP, 2 * HP), lambda i: (0, 0, 0)),       # w1 (resident)
            pl.BlockSpec((L, 1, 2 * HP), lambda i: (0, 0, 0)),        # b1_eff (resident)
            pl.BlockSpec((L, 2 * HP, 2 * DP), lambda i: (0, 0, 0)),   # w2 (resident)
            pl.BlockSpec((L, 1, 2 * DP), lambda i: (0, 0, 0)),        # b2 (resident)
        ],
        out_specs=pl.BlockSpec((tile_n, DP), lambda i: (i, 0)),
        compiler_params=pltpu.CompilerParams(dimension_semantics=("parallel",)),
        cost_estimate=pl.CostEstimate(flops=flops,
                                      transcendentals=transcendentals,
                                      bytes_accessed=bytes_accessed),
    )(z_pad, w1, b1_eff, w2, b2)

    return x_flat[:n, :D].reshape(-1, NC, IMG, IMG)


# --------------------------- parameter creation -------------------------------
def init_params(key):
    ks = jax.random.split(key, 6)

    def w(k, shape, scale=0.1):
        return (scale * jax.random.normal(k, shape)).astype(jnp.float32)

    return {
        # s-net weights (input weight split into image part and label part)
        "sw1x": w(ks[0], (L, D, H)),
        "sw1y": w(ks[1], (L, COND, H)),
        "sb1": jnp.zeros((L, 1, H), jnp.float32),
        "sw2": w(ks[2], (L, H, D)),
        "sb2": jnp.zeros((L, 1, D), jnp.float32),
        # t-net weights
        "tw1x": w(ks[3], (L, D, H)),
        "tw1y": w(ks[4], (L, COND, H)),
        "tb1": jnp.zeros((L, 1, H), jnp.float32),
        "tw2": w(ks[5], (L, H, D)),
        "tb2": jnp.zeros((L, 1, D), jnp.float32),
    }


def pack_params(p):
    """Pack raw per-net weights into fused, lane-padded, bf16 kernel weights."""
    # fused first layer: [sw1x || tw1x] -> (L, DP, 2*HP)
    w1 = jnp.zeros((L, DP, 2 * HP), jnp.float32)
    w1 = w1.at[:, :D, :H].set(p["sw1x"])
    w1 = w1.at[:, :D, HP:HP + H].set(p["tw1x"])

    # label part of first layer (folded into a per-layer bias in the wrapper)
    wy1 = jnp.zeros((L, COND, 2 * HP), jnp.float32)
    wy1 = wy1.at[:, :, :H].set(p["sw1y"])
    wy1 = wy1.at[:, :, HP:HP + H].set(p["tw1y"])

    b1 = jnp.zeros((L, 1, 2 * HP), jnp.float32)
    b1 = b1.at[:, :, :H].set(p["sb1"])
    b1 = b1.at[:, :, HP:HP + H].set(p["tb1"])

    # fused block-diagonal second layer: (L, 2*HP, 2*DP), output = [s || t]
    w2 = jnp.zeros((L, 2 * HP, 2 * DP), jnp.float32)
    w2 = w2.at[:, :H, :D].set(p["sw2"])
    w2 = w2.at[:, HP:HP + H, DP:DP + D].set(p["tw2"])

    b2 = jnp.zeros((L, 1, 2 * DP), jnp.float32)
    b2 = b2.at[:, :, :D].set(p["sb2"])
    b2 = b2.at[:, :, DP:DP + D].set(p["tb2"])

    return {
        "w1": w1.astype(jnp.bfloat16),
        "w2": w2.astype(jnp.bfloat16),
        "wy1": wy1,
        "b1": b1,
        "b2": b2,
    }


# --------------------------------- main ---------------------------------------
if __name__ == "__main__":
    key = jax.random.PRNGKey(0)
    k_param, k_z = jax.random.split(key)

    raw_params = init_params(k_param)
    packed = pack_params(raw_params)
    z = jax.random.normal(k_z, (N, D), jnp.float32)

    x = igan_forward(z, packed, y=3)
    x = jax.block_until_ready(x)

    assert x.shape == (N, NC, IMG, IMG), x.shape
    assert bool(jnp.all(jnp.isfinite(x)))
    print("KERNEL_OK")
</pallas_src>

<mosaic_0001>
module attributes {stable_mosaic.version = 11 : i64} {
  func.func @igan_inverse_kernel(%arg0: i32, %arg1: memref<8x128xf32, #tpu.memory_space<vmem>>, %arg2: memref<4x128x128xbf16, #tpu.memory_space<vmem>>, %arg3: memref<4x1x128xf32, #tpu.memory_space<vmem>>, %arg4: memref<4x128x256xbf16, #tpu.memory_space<vmem>>, %arg5: memref<4x1x256xf32, #tpu.memory_space<vmem>>, %arg6: memref<8x128xf32, #tpu.memory_space<vmem>>) attributes {dimension_semantics = [#tpu.dimension_semantics<parallel>], iteration_bounds = array<i64: 1>, scalar_prefetch = 0 : i64, scratch_operands = 0 : i64, tpu.core_type = #tpu.core_type<tc>, window_params = [{transform_indices = @transform_0, window_bounds = array<i64: 8, 128>}, {pipeline_mode = #tpu.pipeline_mode<synchronous>, transform_indices = @transform_1, window_bounds = array<i64: 4, 128, 128>}, {pipeline_mode = #tpu.pipeline_mode<synchronous>, transform_indices = @transform_2, window_bounds = array<i64: 4, 1, 128>}, {pipeline_mode = #tpu.pipeline_mode<synchronous>, transform_indices = @transform_3, window_bounds = array<i64: 4, 128, 256>}, {pipeline_mode = #tpu.pipeline_mode<synchronous>, transform_indices = @transform_4, window_bounds = array<i64: 4, 1, 256>}, {transform_indices = @transform_5, window_bounds = array<i64: 8, 128>}]} {
    %c0 = arith.constant 0 : index
    %c0_0 = arith.constant 0 : index
    %0 = vector.load %arg1[%c0, %c0_0] : memref<8x128xf32, #tpu.memory_space<vmem>>, vector<8x128xf32>
    %1 = tpu.iota {dimensions = array<i32: 1>} : vector<8x128xi32>
    %c2_i32 = arith.constant 2 : i32
    %c0_i32 = arith.constant 0 : i32
    %2 = arith.cmpi eq, %c2_i32, %c0_i32 : i32
    %c1_i32 = arith.constant 1 : i32
    %3 = arith.select %2, %c1_i32, %c2_i32 : i32
    %4 = vector.broadcast %3 : i32 to vector<8x128xi32>
    %5 = arith.remsi %1, %4 : vector<8x128xi32>
    %c0_i32_1 = arith.constant 0 : i32
    %6 = vector.broadcast %c0_i32_1 : i32 to vector<8x128xi32>
    %7 = arith.cmpi ne, %5, %6 : vector<8x128xi32>
    %c0_i32_2 = arith.constant 0 : i32
    %8 = vector.broadcast %c0_i32_2 : i32 to vector<8x128xi32>
    %9 = arith.cmpi slt, %5, %8 : vector<8x128xi32>
    %c0_i32_3 = arith.constant 0 : i32
    %10 = arith.cmpi slt, %3, %c0_i32_3 : i32
    %11 = vector.broadcast %10 : i1 to vector<8x128xi1>
    %12 = vector.broadcast %11 : vector<8x128xi1> to vector<8x128xi1>
    %13 = arith.xori %9, %12 : vector<8x128xi1>
    %14 = arith.andi %13, %7 : vector<8x128xi1>
    %15 = vector.broadcast %3 : i32 to vector<8x128xi32>
    %16 = arith.addi %5, %15 : vector<8x128xi32>
    %17 = arith.select %14, %16, %5 : vector<8x128xi1>, vector<8x128xi32>
    %18 = tpu.iota {dimensions = array<i32: 1>} : vector<8x128xi32>
    %c64_i32 = arith.constant 64 : i32
    %19 = vector.broadcast %c64_i32 : i32 to vector<8x128xi32>
    %20 = arith.cmpi slt, %18, %19 : vector<8x128xi32>
    %c1_i32_4 = arith.constant 1 : i32
    %21 = vector.broadcast %c1_i32_4 : i32 to vector<8x128xi32>
    %22 = arith.cmpi eq, %17, %21 : vector<8x128xi32>
    %cst = arith.constant 0.000000e+00 : f32
    %23 = vector.broadcast %cst : f32 to vector<8x128xf32>
    %24 = arith.select %22, %0, %23 : vector<8x128xi1>, vector<8x128xf32>
    %25 = arith.truncf %24 : vector<8x128xf32> to vector<8x128xbf16>
    %c3 = arith.constant 3 : index
    %c0_5 = arith.constant 0 : index
    %c0_6 = arith.constant 0 : index
    %26 = vector.load %arg2[%c3, %c0_5, %c0_6] : memref<4x128x128xbf16, #tpu.memory_space<vmem>>, vector<1x128x128xbf16>
    %27 = vector.shape_cast %26 : vector<1x128x128xbf16> to vector<128x128xbf16>
    %cst_7 = arith.constant dense<0.000000e+00> : vector<8x128xf32>
    %28 = tpu.matmul %25, %27, %cst_7 {dimension_numbers = #tpu.dot_dimension_numbers<[1], [0], [0], [1], [0, 0, 1, 1], [], []>} : vector<8x128xbf16>, vector<128x128xbf16>, vector<8x128xf32> -> vector<8x128xf32>
    %c3_8 = arith.constant 3 : index
    %c0_9 = arith.constant 0 : index
    %c0_10 = arith.constant 0 : index
    %29 = vector.load %arg3[%c3_8, %c0_9, %c0_10] : memref<4x1x128xf32, #tpu.memory_space<vmem>>, vector<1x1x128xf32>
    %30 = vector.shape_cast %29 : vector<1x1x128xf32> to vector<1x128xf32>
    %31 = vector.broadcast %30 : vector<1x128xf32> to vector<8x128xf32>
    %32 = arith.addf %28, %31 : vector<8x128xf32>
    %33 = math.tanh %32 : vector<8x128xf32>
    %cst_11 = arith.constant 0.000000e+00 : f32
    %34 = vector.broadcast %cst_11 : f32 to vector<8x128xf32>
    %35 = arith.maximumf %32, %34 : vector<8x128xf32>
    %36 = arith.select %20, %33, %35 : vector<8x128xi1>, vector<8x128xf32>
    %37 = arith.truncf %36 : vector<8x128xf32> to vector<8x128xbf16>
    %c3_12 = arith.constant 3 : index
    %c0_13 = arith.constant 0 : index
    %c0_14 = arith.constant 0 : index
    %38 = vector.load %arg4[%c3_12, %c0_13, %c0_14] : memref<4x128x256xbf16, #tpu.memory_space<vmem>>, vector<1x128x256xbf16>
    %39 = vector.shape_cast %38 : vector<1x128x256xbf16> to vector<128x256xbf16>
    %cst_15 = arith.constant dense<0.000000e+00> : vector<8x256xf32>
    %40 = tpu.matmul %37, %39, %cst_15 {dimension_numbers = #tpu.dot_dimension_numbers<[1], [0], [0], [1], [0, 0, 1, 1], [], []>} : vector<8x128xbf16>, vector<128x256xbf16>, vector<8x256xf32> -> vector<8x256xf32>
    %c3_16 = arith.constant 3 : index
    %c0_17 = arith.constant 0 : index
    %c0_18 = arith.constant 0 : index
    %41 = vector.load %arg5[%c3_16, %c0_17, %c0_18] : memref<4x1x256xf32, #tpu.memory_space<vmem>>, vector<1x1x256xf32>
    %42 = vector.shape_cast %41 : vector<1x1x256xf32> to vector<1x256xf32>
    %43 = vector.broadcast %42 : vector<1x256xf32> to vector<8x256xf32>
    %44 = arith.addf %40, %43 : vector<8x256xf32>
    %45 = vector.extract_strided_slice %44 {offsets = [0, 0], sizes = [8, 128], strides = [1, 1]} : vector<8x256xf32> to vector<8x128xf32>
    %46 = vector.extract_strided_slice %44 {offsets = [0, 128], sizes = [8, 128], strides = [1, 1]} : vector<8x256xf32> to vector<8x128xf32>
    %47 = math.exp %45 : vector<8x128xf32>
    %48 = arith.mulf %0, %47 : vector<8x128xf32>
    %49 = arith.addf %48, %46 : vector<8x128xf32>
    %50 = arith.select %22, %0, %49 : vector<8x128xi1>, vector<8x128xf32>
    %c0_i32_19 = arith.constant 0 : i32
    %51 = vector.broadcast %c0_i32_19 : i32 to vector<8x128xi32>
    %52 = arith.cmpi eq, %17, %51 : vector<8x128xi32>
    %cst_20 = arith.constant 0.000000e+00 : f32
    %53 = vector.broadcast %cst_20 : f32 to vector<8x128xf32>
    %54 = arith.select %52, %50, %53 : vector<8x128xi1>, vector<8x128xf32>
    %55 = arith.truncf %54 : vector<8x128xf32> to vector<8x128xbf16>
    %c2 = arith.constant 2 : index
    %c0_21 = arith.constant 0 : index
    %c0_22 = arith.constant 0 : index
    %56 = vector.load %arg2[%c2, %c0_21, %c0_22] : memref<4x128x128xbf16, #tpu.memory_space<vmem>>, vector<1x128x128xbf16>
    %57 = vector.shape_cast %56 : vector<1x128x128xbf16> to vector<128x128xbf16>
    %cst_23 = arith.constant dense<0.000000e+00> : vector<8x128xf32>
    %58 = tpu.matmul %55, %57, %cst_23 {dimension_numbers = #tpu.dot_dimension_numbers<[1], [0], [0], [1], [0, 0, 1, 1], [], []>} : vector<8x128xbf16>, vector<128x128xbf16>, vector<8x128xf32> -> vector<8x128xf32>
    %c2_24 = arith.constant 2 : index
    %c0_25 = arith.constant 0 : index
    %c0_26 = arith.constant 0 : index
    %59 = vector.load %arg3[%c2_24, %c0_25, %c0_26] : memref<4x1x128xf32, #tpu.memory_space<vmem>>, vector<1x1x128xf32>
    %60 = vector.shape_cast %59 : vector<1x1x128xf32> to vector<1x128xf32>
    %61 = vector.broadcast %60 : vector<1x128xf32> to vector<8x128xf32>
    %62 = arith.addf %58, %61 : vector<8x128xf32>
    %63 = math.tanh %62 : vector<8x128xf32>
    %cst_27 = arith.constant 0.000000e+00 : f32
    %64 = vector.broadcast %cst_27 : f32 to vector<8x128xf32>
    %65 = arith.maximumf %62, %64 : vector<8x128xf32>
    %66 = arith.select %20, %63, %65 : vector<8x128xi1>, vector<8x128xf32>
    %67 = arith.truncf %66 : vector<8x128xf32> to vector<8x128xbf16>
    %c2_28 = arith.constant 2 : index
    %c0_29 = arith.constant 0 : index
    %c0_30 = arith.constant 0 : index
    %68 = vector.load %arg4[%c2_28, %c0_29, %c0_30] : memref<4x128x256xbf16, #tpu.memory_space<vmem>>, vector<1x128x256xbf16>
    %69 = vector.shape_cast %68 : vector<1x128x256xbf16> to vector<128x256xbf16>
    %cst_31 = arith.constant dense<0.000000e+00> : vector<8x256xf32>
    %70 = tpu.matmul %67, %69, %cst_31 {dimension_numbers = #tpu.dot_dimension_numbers<[1], [0], [0], [1], [0, 0, 1, 1], [], []>} : vector<8x128xbf16>, vector<128x256xbf16>, vector<8x256xf32> -> vector<8x256xf32>
    %c2_32 = arith.constant 2 : index
    %c0_33 = arith.constant 0 : index
    %c0_34 = arith.constant 0 : index
    %71 = vector.load %arg5[%c2_32, %c0_33, %c0_34] : memref<4x1x256xf32, #tpu.memory_space<vmem>>, vector<1x1x256xf32>
    %72 = vector.shape_cast %71 : vector<1x1x256xf32> to vector<1x256xf32>
    %73 = vector.broadcast %72 : vector<1x256xf32> to vector<8x256xf32>
    %74 = arith.addf %70, %73 : vector<8x256xf32>
    %75 = vector.extract_strided_slice %74 {offsets = [0, 0], sizes = [8, 128], strides = [1, 1]} : vector<8x256xf32> to vector<8x128xf32>
    %76 = vector.extract_strided_slice %74 {offsets = [0, 128], sizes = [8, 128], strides = [1, 1]} : vector<8x256xf32> to vector<8x128xf32>
    %77 = math.exp %75 : vector<8x128xf32>
    %78 = arith.mulf %50, %77 : vector<8x128xf32>
    %79 = arith.addf %78, %76 : vector<8x128xf32>
    %80 = arith.select %52, %50, %79 : vector<8x128xi1>, vector<8x128xf32>
    %c1_i32_35 = arith.constant 1 : i32
    %81 = vector.broadcast %c1_i32_35 : i32 to vector<8x128xi32>
    %82 = arith.cmpi eq, %17, %81 : vector<8x128xi32>
    %cst_36 = arith.constant 0.000000e+00 : f32
    %83 = vector.broadcast %cst_36 : f32 to vector<8x128xf32>
    %84 = arith.select %82, %80, %83 : vector<8x128xi1>, vector<8x128xf32>
    %85 = arith.truncf %84 : vector<8x128xf32> to vector<8x128xbf16>
    %c1 = arith.constant 1 : index
    %c0_37 = arith.constant 0 : index
    %c0_38 = arith.constant 0 : index
    %86 = vector.load %arg2[%c1, %c0_37, %c0_38] : memref<4x128x128xbf16, #tpu.memory_space<vmem>>, vector<1x128x128xbf16>
    %87 = vector.shape_cast %86 : vector<1x128x128xbf16> to vector<128x128xbf16>
    %cst_39 = arith.constant dense<0.000000e+00> : vector<8x128xf32>
    %88 = tpu.matmul %85, %87, %cst_39 {dimension_numbers = #tpu.dot_dimension_numbers<[1], [0], [0], [1], [0, 0, 1, 1], [], []>} : vector<8x128xbf16>, vector<128x128xbf16>, vector<8x128xf32> -> vector<8x128xf32>
    %c1_40 = arith.constant 1 : index
    %c0_41 = arith.constant 0 : index
    %c0_42 = arith.constant 0 : index
    %89 = vector.load %arg3[%c1_40, %c0_41, %c0_42] : memref<4x1x128xf32, #tpu.memory_space<vmem>>, vector<1x1x128xf32>
    %90 = vector.shape_cast %89 : vector<1x1x128xf32> to vector<1x128xf32>
    %91 = vector.broadcast %90 : vector<1x128xf32> to vector<8x128xf32>
    %92 = arith.addf %88, %91 : vector<8x128xf32>
    %93 = math.tanh %92 : vector<8x128xf32>
    %cst_43 = arith.constant 0.000000e+00 : f32
    %94 = vector.broadcast %cst_43 : f32 to vector<8x128xf32>
    %95 = arith.maximumf %92, %94 : vector<8x128xf32>
    %96 = arith.select %20, %93, %95 : vector<8x128xi1>, vector<8x128xf32>
    %97 = arith.truncf %96 : vector<8x128xf32> to vector<8x128xbf16>
    %c1_44 = arith.constant 1 : index
    %c0_45 = arith.constant 0 : index
    %c0_46 = arith.constant 0 : index
    %98 = vector.load %arg4[%c1_44, %c0_45, %c0_46] : memref<4x128x256xbf16, #tpu.memory_space<vmem>>, vector<1x128x256xbf16>
    %99 = vector.shape_cast %98 : vector<1x128x256xbf16> to vector<128x256xbf16>
    %cst_47 = arith.constant dense<0.000000e+00> : vector<8x256xf32>
    %100 = tpu.matmul %97, %99, %cst_47 {dimension_numbers = #tpu.dot_dimension_numbers<[1], [0], [0], [1], [0, 0, 1, 1], [], []>} : vector<8x128xbf16>, vector<128x256xbf16>, vector<8x256xf32> -> vector<8x256xf32>
    %c1_48 = arith.constant 1 : index
    %c0_49 = arith.constant 0 : index
    %c0_50 = arith.constant 0 : index
    %101 = vector.load %arg5[%c1_48, %c0_49, %c0_50] : memref<4x1x256xf32, #tpu.memory_space<vmem>>, vector<1x1x256xf32>
    %102 = vector.shape_cast %101 : vector<1x1x256xf32> to vector<1x256xf32>
    %103 = vector.broadcast %102 : vector<1x256xf32> to vector<8x256xf32>
    %104 = arith.addf %100, %103 : vector<8x256xf32>
    %105 = vector.extract_strided_slice %104 {offsets = [0, 0], sizes = [8, 128], strides = [1, 1]} : vector<8x256xf32> to vector<8x128xf32>
    %106 = vector.extract_strided_slice %104 {offsets = [0, 128], sizes = [8, 128], strides = [1, 1]} : vector<8x256xf32> to vector<8x128xf32>
    %107 = math.exp %105 : vector<8x128xf32>
    %108 = arith.mulf %80, %107 : vector<8x128xf32>
    %109 = arith.addf %108, %106 : vector<8x128xf32>
    %110 = arith.select %82, %80, %109 : vector<8x128xi1>, vector<8x128xf32>
    %c0_i32_51 = arith.constant 0 : i32
    %111 = vector.broadcast %c0_i32_51 : i32 to vector<8x128xi32>
    %112 = arith.cmpi eq, %17, %111 : vector<8x128xi32>
    %cst_52 = arith.constant 0.000000e+00 : f32
    %113 = vector.broadcast %cst_52 : f32 to vector<8x128xf32>
    %114 = arith.select %112, %110, %113 : vector<8x128xi1>, vector<8x128xf32>
    %115 = arith.truncf %114 : vector<8x128xf32> to vector<8x128xbf16>
    %c0_53 = arith.constant 0 : index
    %c0_54 = arith.constant 0 : index
    %c0_55 = arith.constant 0 : index
    %116 = vector.load %arg2[%c0_53, %c0_54, %c0_55] : memref<4x128x128xbf16, #tpu.memory_space<vmem>>, vector<1x128x128xbf16>
    %117 = vector.shape_cast %116 : vector<1x128x128xbf16> to vector<128x128xbf16>
    %cst_56 = arith.constant dense<0.000000e+00> : vector<8x128xf32>
    %118 = tpu.matmul %115, %117, %cst_56 {dimension_numbers = #tpu.dot_dimension_numbers<[1], [0], [0], [1], [0, 0, 1, 1], [], []>} : vector<8x128xbf16>, vector<128x128xbf16>, vector<8x128xf32> -> vector<8x128xf32>
    %c0_57 = arith.constant 0 : index
    %c0_58 = arith.constant 0 : index
    %c0_59 = arith.constant 0 : index
    %119 = vector.load %arg3[%c0_57, %c0_58, %c0_59] : memref<4x1x128xf32, #tpu.memory_space<vmem>>, vector<1x1x128xf32>
    %120 = vector.shape_cast %119 : vector<1x1x128xf32> to vector<1x128xf32>
    %121 = vector.broadcast %120 : vector<1x128xf32> to vector<8x128xf32>
    %122 = arith.addf %118, %121 : vector<8x128xf32>
    %123 = math.tanh %122 : vector<8x128xf32>
    %cst_60 = arith.constant 0.000000e+00 : f32
    %124 = vector.broadcast %cst_60 : f32 to vector<8x128xf32>
    %125 = arith.maximumf %122, %124 : vector<8x128xf32>
    %126 = arith.select %20, %123, %125 : vector<8x128xi1>, vector<8x128xf32>
    %127 = arith.truncf %126 : vector<8x128xf32> to vector<8x128xbf16>
    %c0_61 = arith.constant 0 : index
    %c0_62 = arith.constant 0 : index
    %c0_63 = arith.constant 0 : index
    %128 = vector.load %arg4[%c0_61, %c0_62, %c0_63] : memref<4x128x256xbf16, #tpu.memory_space<vmem>>, vector<1x128x256xbf16>
    %129 = vector.shape_cast %128 : vector<1x128x256xbf16> to vector<128x256xbf16>
    %cst_64 = arith.constant dense<0.000000e+00> : vector<8x256xf32>
    %130 = tpu.matmul %127, %129, %cst_64 {dimension_numbers = #tpu.dot_dimension_numbers<[1], [0], [0], [1], [0, 0, 1, 1], [], []>} : vector<8x128xbf16>, vector<128x256xbf16>, vector<8x256xf32> -> vector<8x256xf32>
    %c0_65 = arith.constant 0 : index
    %c0_66 = arith.constant 0 : index
    %c0_67 = arith.constant 0 : index
    %131 = vector.load %arg5[%c0_65, %c0_66, %c0_67] : memref<4x1x256xf32, #tpu.memory_space<vmem>>, vector<1x1x256xf32>
    %132 = vector.shape_cast %131 : vector<1x1x256xf32> to vector<1x256xf32>
    %133 = vector.broadcast %132 : vector<1x256xf32> to vector<8x256xf32>
    %134 = arith.addf %130, %133 : vector<8x256xf32>
    %135 = vector.extract_strided_slice %134 {offsets = [0, 0], sizes = [8, 128], strides = [1, 1]} : vector<8x256xf32> to vector<8x128xf32>
    %136 = vector.extract_strided_slice %134 {offsets = [0, 128], sizes = [8, 128], strides = [1, 1]} : vector<8x256xf32> to vector<8x128xf32>
    %137 = math.exp %135 : vector<8x128xf32>
    %138 = arith.mulf %110, %137 : vector<8x128xf32>
    %139 = arith.addf %138, %136 : vector<8x128xf32>
    %140 = arith.select %112, %110, %139 : vector<8x128xi1>, vector<8x128xf32>
    %141 = arith.negf %140 : vector<8x128xf32>
    %142 = math.exp %141 : vector<8x128xf32>
    %cst_68 = arith.constant 1.000000e+00 : f32
    %143 = vector.broadcast %cst_68 : f32 to vector<8x128xf32>
    %144 = arith.addf %143, %142 : vector<8x128xf32>
    %145 = arith.divf %143, %144 : vector<8x128xf32>
    %cst_69 = arith.constant 9.99999997E-7 : f32
    %146 = vector.broadcast %cst_69 : f32 to vector<8x128xf32>
    %147 = arith.subf %145, %146 : vector<8x128xf32>
    %cst_70 = arith.constant 0.999997973 : f32
    %148 = vector.broadcast %cst_70 : f32 to vector<8x128xf32>
    %149 = arith.divf %147, %148 : vector<8x128xf32>
    %c0_71 = arith.constant 0 : index
    %c0_72 = arith.constant 0 : index
    %150 = vector.load %arg6[%c0_71, %c0_72] : memref<8x128xf32, #tpu.memory_space<vmem>>, vector<8x128xf32>
    tpu.vector_store %arg6[%c0_71, %c0_72], %149 {strides = array<i32>} : memref<8x128xf32, #tpu.memory_space<vmem>>, vector<8x128xf32>,
    return
  }
  func.func @transform_0(%arg0: i32) -> (i32, i32) {
    %c0_i32 = arith.constant 0 : i32
    %c0_i32_0 = arith.constant 0 : i32
    return %arg0, %c0_i32 : i32, i32
  }
  func.func @transform_1(%arg0: i32) -> (i32, i32, i32) {
    %c0_i32 = arith.constant 0 : i32
    %c0_i32_0 = arith.constant 0 : i32
    %c0_i32_1 = arith.constant 0 : i32
    %c0_i32_2 = arith.constant 0 : i32
    return %c0_i32, %c0_i32_0, %c0_i32_1 : i32, i32, i32
  }
  func.func @transform_2(%arg0: i32) -> (i32, i32, i32) {
    %c0_i32 = arith.constant 0 : i32
    %c0_i32_0 = arith.constant 0 : i32
    %c0_i32_1 = arith.constant 0 : i32
    %c0_i32_2 = arith.constant 0 : i32
    return %c0_i32, %c0_i32_0, %c0_i32_1 : i32, i32, i32
  }
  func.func @transform_3(%arg0: i32) -> (i32, i32, i32) {
    %c0_i32 = arith.constant 0 : i32
    %c0_i32_0 = arith.constant 0 : i32
    %c0_i32_1 = arith.constant 0 : i32
    %c0_i32_2 = arith.constant 0 : i32
    return %c0_i32, %c0_i32_0, %c0_i32_1 : i32, i32, i32
  }
  func.func @transform_4(%arg0: i32) -> (i32, i32, i32) {
    %c0_i32 = arith.constant 0 : i32
    %c0_i32_0 = arith.constant 0 : i32
    %c0_i32_1 = arith.constant 0 : i32
    %c0_i32_2 = arith.constant 0 : i32
    return %c0_i32, %c0_i32_0, %c0_i32_1 : i32, i32, i32
  }
  func.func @transform_5(%arg0: i32) -> (i32, i32) {
    %c0_i32 = arith.constant 0 : i32
    %c0_i32_0 = arith.constant 0 : i32
    return %arg0, %c0_i32 : i32, i32
  }
}

</mosaic_0001>

<llo_original>
// kernel: tpu_custom_call.1
$region0: #{tpu_custom_call.1}
  #allocation0 [shape = 'u32[]', space=smem, size = 0x4, offset = 0x4, fixed_abs, tag = 'smem constant byte address 0x4 - core index']
  #allocation1 [shape = 'u32[144,128]{1,0:T(1,128)}', space=vmem, size = 0x12000, scoped, tag = 'internal scratch']
  %s0 = inlined_call_operand.hbm [shape: f32[8,128], index: 0, kind: input, shape index: {}]
  %s1 = inlined_call_operand.hbm [shape: bf16[4,128,128], index: 1, kind: input, shape index: {}]
  %s2 = inlined_call_operand.hbm [shape: f32[4,1,128], index: 2, kind: input, shape index: {}]
  %s3 = inlined_call_operand.hbm [shape: bf16[4,128,256], index: 3, kind: input, shape index: {}]
  %s4 = inlined_call_operand.hbm [shape: f32[4,1,256], index: 4, kind: input, shape index: {}]
  %s5 = inlined_call_operand.hbm [shape: f32[8,128], index: 5, kind: output, shape index: {}]
  %s6 = sld [smem:[#allocation0]]
  $region50: #{tpu_custom_call.1} parent=0
    _
  %s8 = ssub.s32 1, %s6
  %s9 = scalar_select 0, %s8, %s6
  $region1: #{tpu_custom_call.1} parent=0
    #allocation2 [shape = 'u8[4096]{0}', space=vmem, size = 0x1000, scoped, tag = 'input window, operand 0, single buffered']
    #allocation3 [shape = 's32[1]{0}', space=sflag, size = 0x4, scoped, tag = 'scoped memory for tpu_custom_call.1']
    #allocation4 [shape = 's32[1]{0}', space=sflag, size = 0x4, scoped, tag = 'scoped memory for tpu_custom_call.1']
    #allocation5 [shape = 'u8[131072]{0}', space=vmem, size = 0x20000, scoped, tag = 'input window, operand 1, single buffered']
    #allocation6 [shape = 's32[1]{0}', space=sflag, size = 0x4, scoped, tag = 'scoped memory for tpu_custom_call.1']
    #allocation7 [shape = 'u8[2048]{0}', space=vmem, size = 0x800, scoped, tag = 'input window, operand 2, single buffered']
    #allocation8 [shape = 'u8[262144]{0}', space=vmem, size = 0x40000, scoped, tag = 'input window, operand 3, single buffered']
    #allocation9 [shape = 's32[1]{0}', space=sflag, size = 0x4, scoped, tag = 'scoped memory for tpu_custom_call.1']
    #allocation10 [shape = 'u8[4096]{0}', space=vmem, size = 0x1000, scoped, tag = 'input window, operand 4, single buffered']
    #allocation11 [shape = 'u8[4096]{0}', space=vmem, size = 0x1000, scoped, tag = 'output window, operand 0, single buffered']
    %10 = vsyncpa [#allocation3], 0
    %11 = vsyncpa [#allocation6], 0
    %12 = vsyncpa [#allocation9], 0
    %13 = vsyncpa [#allocation4], 0
    // Predicated region
    $region2: #{tpu_custom_call.1} parent=1 // pred_check
      _
    $region3: #{tpu_custom_call.1} parent=1 // pred_check_branch
      %15 = sbr.rel (0) target = $region5
    $region4: #{tpu_custom_call.1} parent=1 // pred_region
      %s17 = ssub.s32 128, 128
      %18 = vsyncadd [#allocation3], %s17
      %s20 = sshll.u32 [#allocation2], 4
      %s21 = int_to_ptr.vmem [resolvable:$true] %s20
      %23 = dma.hbm_to_vmem [thread:$0]  %s0, 128, %s21, [#allocation3]
    $region5: #{tpu_custom_call.1} parent=1 // pred_fallthru
      _
    // Predicated region
    $region6: #{tpu_custom_call.1} parent=1 // pred_check
      _
    $region7: #{tpu_custom_call.1} parent=1 // pred_check_branch
      %25 = sbr.rel (0) target = $region9
    $region8: #{tpu_custom_call.1} parent=1 // pred_region
      %s27 = ssub.s32 4096, 4096
      %28 = vsyncadd [#allocation6], %s27
      %s29 = sshll.u32 [#allocation5], 4
      %s30 = int_to_ptr.vmem [resolvable:$true] %s29
      %35 = dma.hbm_to_vmem [thread:$0]  %s1, 4096, %s30, [#allocation6], 64, 64, 4
    $region9: #{tpu_custom_call.1} parent=1 // pred_fallthru
      _
    // Predicated region
    $region10: #{tpu_custom_call.1} parent=1 // pred_check
      _
    $region11: #{tpu_custom_call.1} parent=1 // pred_check_branch
      %37 = sbr.rel (0) target = $region13
    $region12: #{tpu_custom_call.1} parent=1 // pred_region
      %s39 = ssub.s32 64, 64
      %40 = vsyncadd [#allocation6], %s39
      %s41 = sshll.u32 [#allocation7], 4
      %s42 = int_to_ptr.vmem [resolvable:$true] %s41
      %47 = dma.hbm_to_vmem [thread:$0]  %s2, 64, %s42, [#allocation6], 16, 16, 1
    $region13: #{tpu_custom_call.1} parent=1 // pred_fallthru
      _
    // Predicated region
    $region14: #{tpu_custom_call.1} parent=1 // pred_check
      _
    $region15: #{tpu_custom_call.1} parent=1 // pred_check_branch
      %49 = sbr.rel (0) target = $region17
    $region16: #{tpu_custom_call.1} parent=1 // pred_region
      %s51 = ssub.s32 8192, 8192
      %52 = vsyncadd [#allocation9], %s51
      %s53 = sshll.u32 [#allocation8], 4
      %s54 = int_to_ptr.vmem [resolvable:$true] %s53
      %59 = dma.hbm_to_vmem [thread:$0]  %s3, 8192, %s54, [#allocation9], 128, 128, 8
    $region17: #{tpu_custom_call.1} parent=1 // pred_fallthru
      _
    // Predicated region
    $region18: #{tpu_custom_call.1} parent=1 // pred_check
      _
    $region19: #{tpu_custom_call.1} parent=1 // pred_check_branch
      %61 = sbr.rel (0) target = $region21
    $region20: #{tpu_custom_call.1} parent=1 // pred_region
      %s63 = ssub.s32 128, 128
      %64 = vsyncadd [#allocation9], %s63
      %s65 = sshll.u32 [#allocation10], 4
      %s66 = int_to_ptr.vmem [resolvable:$true] %s65
      %71 = dma.hbm_to_vmem [thread:$0]  %s4, 128, %s66, [#allocation9], 32, 32, 2
    $region21: #{tpu_custom_call.1} parent=1 // pred_fallthru
      _
    // Predicated region
    $region22: #{tpu_custom_call.1} parent=1 // pred_check
      _
    $region23: #{tpu_custom_call.1} parent=1 // pred_check_branch
      %73 = sbr.rel (0) target = $region25
    $region24: #{tpu_custom_call.1} parent=1 // pred_region
      %74 = dma.done [#allocation3], 128
    $region25: #{tpu_custom_call.1} parent=1 // pred_fallthru
      _
    // Predicated region
    $region26: #{tpu_custom_call.1} parent=1 // pred_check
      _
    $region27: #{tpu_custom_call.1} parent=1 // pred_check_branch
      %76 = sbr.rel (0) target = $region29
    $region28: #{tpu_custom_call.1} parent=1 // pred_region
      %77 = dma.done [#allocation6], 4096
    $region29: #{tpu_custom_call.1} parent=1 // pred_fallthru
      _
    // Predicated region
    $region30: #{tpu_custom_call.1} parent=1 // pred_check
      _
    $region31: #{tpu_custom_call.1} parent=1 // pred_check_branch
      %79 = sbr.rel (0) target = $region33
    $region32: #{tpu_custom_call.1} parent=1 // pred_region
      %80 = dma.done [#allocation6], 64
    $region33: #{tpu_custom_call.1} parent=1 // pred_fallthru
      _
    // Predicated region
    $region34: #{tpu_custom_call.1} parent=1 // pred_check
      _
    $region35: #{tpu_custom_call.1} parent=1 // pred_check_branch
      %82 = sbr.rel (0) target = $region37
    $region36: #{tpu_custom_call.1} parent=1 // pred_region
      %83 = dma.done [#allocation9], 8192
    $region37: #{tpu_custom_call.1} parent=1 // pred_fallthru
      _
    // Predicated region
    $region38: #{tpu_custom_call.1} parent=1 // pred_check
      _
    $region39: #{tpu_custom_call.1} parent=1 // pred_check_branch
      %85 = sbr.rel (0) target = $region41
    $region40: #{tpu_custom_call.1} parent=1 // pred_region
      %86 = dma.done [#allocation9], 128
    $region41: #{tpu_custom_call.1} parent=1 // pred_fallthru
      _
    %v88 = vld [vmem:[#allocation2] sm:$0xff]
    %v89 = vlaneseq
    %v90 = vand.u32 %v89, 127
    %vm91 = vcmp.lt.s32.totalorder %v90, 0
    %v92 = vsub.s32 0, %v90
    %v93 = vsel %vm91, %v92, %v90
    %v94 = vshrl.u32 %v93, 1
    %v95 = vand.u32 %v93, 1
    %v96 = vsub.s32 0, %v95
    %v97 = vsel %vm91, %v96, %v95
    %vm98 = vcmp.ne.s32.totalorder %v97, 0
    %vm99 = vcmp.lt.s32.totalorder %v97, 0
    %vm100 = vmand %vm99, %vm98
    %v101 = vadd.s32 %v97, 2
    %v102 = vsel %vm100, %v101, %v97
    %vm103 = vcmp.lt.s32.totalorder %v90, 64
    %vm104 = vcmp.eq.s32.totalorder %v102, 1
    %v105 = vsel %vm104, %v88, 0.0
    %v106 = vpack.c.bf16 %v105, %v105
    %s107 = scalar_lea.vmem [#allocation5], 192
    %v108 = vld [vmem:[%s107] sm:$0xf]
    %v109 = vld [vmem:[%s107 + $0x4] sm:$0xf]
    %v110 = vld [vmem:[%s107 + $0x8] sm:$0xf]
    %v111 = vld [vmem:[%s107 + $0xc] sm:$0xf]
    %v112 = vld [vmem:[%s107 + $0x10] sm:$0xf]
    %v113 = vld [vmem:[%s107 + $0x14] sm:$0xf]
    %v114 = vld [vmem:[%s107 + $0x18] sm:$0xf]
    %v115 = vld [vmem:[%s107 + $0x1c] sm:$0xf]
    %v116 = vld [vmem:[%s107 + $0x20] sm:$0xf]
    %v117 = vld [vmem:[%s107 + $0x24] sm:$0xf]
    %v118 = vld [vmem:[%s107 + $0x28] sm:$0xf]
    %v119 = vld [vmem:[%s107 + $0x2c] sm:$0xf]
    %v120 = vld [vmem:[%s107 + $0x30] sm:$0xf]
    %v121 = vld [vmem:[%s107 + $0x34] sm:$0xf]
    %v122 = vld [vmem:[%s107 + $0x38] sm:$0xf]
    %v123 = vld [vmem:[%s107 + $0x3c] sm:$0xf]
    %s124 = scalar_lea.vmem [#allocation7], 3
    %v125 = vld [vmem:[%s124] sm:$0x1]
    %v127 = vlaneseq
    %v128 = vshrl.u32 %v127, 7
    %v129 = vsub.s32 0, %v128
    %v130 = vrot.slane %v125, %v129
    %v148 = vunpack.c.l.b16 %v108
    %v149 = vunpack.c.l.b16 %v109
    %v150 = vunpack.c.l.b16 %v110
    %v151 = vunpack.c.l.b16 %v111
    %v152 = vunpack.c.l.b16 %v112
    %v153 = vunpack.c.l.b16 %v113
    %v154 = vunpack.c.l.b16 %v114
    %v155 = vunpack.c.l.b16 %v115
    %v156 = vunpack.c.l.b16 %v116
    %v157 = vunpack.c.l.b16 %v117
    %v158 = vunpack.c.l.b16 %v118
    %v159 = vunpack.c.l.b16 %v119
    %v160 = vunpack.c.l.b16 %v120
    %v161 = vunpack.c.l.b16 %v121
    %v162 = vunpack.c.l.b16 %v122
    %v163 = vunpack.c.l.b16 %v123
    %v164 = vpack.c.b16 %v149, %v148
    %v165 = vpack.c.b16 %v151, %v150
    %v166 = vpack.c.b16 %v153, %v152
    %v167 = vpack.c.b16 %v155, %v154
    %v168 = vpack.c.b16 %v157, %v156
    %v169 = vpack.c.b16 %v159, %v158
    %v170 = vpack.c.b16 %v161, %v160
    %v171 = vpack.c.b16 %v163, %v162
    %180 = vmatprep.subr.bf16.mxu0 0
    %181 = vmatpush1.bf16.msra.mxu0 %v171
    %182 = vmatprep.subr.bf16.mxu0 0
    %183 = vmatpush1.bf16.msra.mxu0 %v170
    %184 = vmatprep.subr.bf16.mxu0 0
    %185 = vmatpush1.bf16.msra.mxu0 %v169
    %186 = vmatprep.subr.bf16.mxu0 0
    %187 = vmatpush1.bf16.msra.mxu0 %v168
    %188 = vmatprep.subr.bf16.mxu0 0
    %189 = vmatpush1.bf16.msra.mxu0 %v167
    %190 = vmatprep.subr.bf16.mxu0 0
    %191 = vmatpush1.bf16.msra.mxu0 %v166
    %192 = vmatprep.subr.bf16.mxu0 0
    %193 = vmatpush1.bf16.msra.mxu0 %v165
    %194 = vmatprep.subr.bf16.mxu0 0
    %195 = vmatpush1.bf16.msra.mxu0 %v164
    %196 = vmatprep.subr.bf16.mxu0 0
    %197 = vmatpush2.bf16.msra.mxu0 0
    %198 = vmatprep.subr.bf16.mxu0 0
    %199 = vmatpush2.bf16.msra.mxu0 0
    %200 = vmatprep.subr.bf16.mxu0 0
    %201 = vmatpush2.bf16.msra.mxu0 0
    %202 = vmatprep.subr.bf16.mxu0 0
    %203 = vmatpush2.bf16.msra.mxu0 0
    %204 = vmatprep.subr.bf16.mxu0 0
    %205 = vmatpush2.bf16.msra.mxu0 0
    %206 = vmatprep.subr.bf16.mxu0 0
    %207 = vmatpush2.bf16.msra.mxu0 0
    %208 = vmatprep.subr.bf16.mxu0 0
    %209 = vmatpush2.bf16.msra.mxu0 0
    %210 = vmatprep.subr.bf16.mxu0 0
    %211 = vmatpush2.bf16.msra.mxu0 0
    %212 = vmatprep.mubr.bf16.mxu0 0
    %213 = vmatmul.mubr.bf16.gmra.mxu0 %v106
    %v214 = vpop.f32.mrf.mxu0
    %v215 = vadd.f32 %v130, %v214
    %v216 = vpop.f32.mrf.mxu0
    %v217 = vpop.f32.mrf.mxu0
    %v218 = vpop.f32.mrf.mxu0
    %219 = vdwg.mxu0
    %v220 = vtanh.pop %v215
    %v221 = vmax.f32 %v215, 0.0
    %v222 = vsel %vm103, %v220, %v221
    %v223 = vpack.c.bf16 %v222, %v222
    %s224 = scalar_lea.vmem [#allocation8], 384
    %v225 = vld [vmem:[%s224] sm:$0xff]
    %v226 = vld [vmem:[%s224 + $0x8] sm:$0xff]
    %v227 = vld [vmem:[%s224 + $0x10] sm:$0xff]
    %v228 = vld [vmem:[%s224 + $0x18] sm:$0xff]
    %v229 = vld [vmem:[%s224 + $0x20] sm:$0xff]
    %v230 = vld [vmem:[%s224 + $0x28] sm:$0xff]
    %v231 = vld [vmem:[%s224 + $0x30] sm:$0xff]
    %v232 = vld [vmem:[%s224 + $0x38] sm:$0xff]
    %v233 = vld [vmem:[%s224 + $0x40] sm:$0xff]
    %v234 = vld [vmem:[%s224 + $0x48] sm:$0xff]
    %v235 = vld [vmem:[%s224 + $0x50] sm:$0xff]
    %v236 = vld [vmem:[%s224 + $0x58] sm:$0xff]
    %v237 = vld [vmem:[%s224 + $0x60] sm:$0xff]
    %v238 = vld [vmem:[%s224 + $0x68] sm:$0xff]
    %v239 = vld [vmem:[%s224 + $0x70] sm:$0xff]
    %v240 = vld [vmem:[%s224 + $0x78] sm:$0xff]
    %s241 = scalar_lea.vmem [#allocation10], 6
    %v242 = vld [vmem:[%s241] sm:$0x3]
    %v244 = vlaneseq
    %v245 = vshrl.u32 %v244, 7
    %v246 = vsub.s32 0, %v245
    %v247 = vrot.slane %v242, %v246
    %v248 = vlaneseq
    %v249 = vshrl.u32 %v248, 7
    %v250 = vsub.s32 1, %v249
    %v251 = vrot.slane %v242, %v250
    %v270 = vunpack.c.l.b16 %v225
    %v271 = vunpack.c.h.b16 %v225
    %v272 = vunpack.c.l.b16 %v226
    %v273 = vunpack.c.h.b16 %v226
    %v274 = vunpack.c.l.b16 %v227
    %v275 = vunpack.c.h.b16 %v227
    %v276 = vunpack.c.l.b16 %v228
    %v277 = vunpack.c.h.b16 %v228
    %v278 = vunpack.c.l.b16 %v229
    %v279 = vunpack.c.h.b16 %v229
    %v280 = vunpack.c.l.b16 %v230
    %v281 = vunpack.c.h.b16 %v230
    %v282 = vunpack.c.l.b16 %v231
    %v283 = vunpack.c.h.b16 %v231
    %v284 = vunpack.c.l.b16 %v232
    %v285 = vunpack.c.h.b16 %v232
    %v286 = vunpack.c.l.b16 %v233
    %v287 = vunpack.c.h.b16 %v233
    %v288 = vunpack.c.l.b16 %v234
    %v289 = vunpack.c.h.b16 %v234
    %v290 = vunpack.c.l.b16 %v235
    %v291 = vunpack.c.h.b16 %v235
    %v292 = vunpack.c.l.b16 %v236
    %v293 = vunpack.c.h.b16 %v236
    %v294 = vunpack.c.l.b16 %v237
    %v295 = vunpack.c.h.b16 %v237
    %v296 = vunpack.c.l.b16 %v238
    %v297 = vunpack.c.h.b16 %v238
    %v298 = vunpack.c.l.b16 %v239
    %v299 = vunpack.c.h.b16 %v239
    %v300 = vunpack.c.l.b16 %v240
    %v301 = vunpack.c.h.b16 %v240
    %v302 = vpack.c.b16 %v272, %v270
    %v303 = vpack.c.b16 %v273, %v271
    %v304 = vpack.c.b16 %v276, %v274
    %v305 = vpack.c.b16 %v277, %v275
    %v306 = vpack.c.b16 %v280, %v278
    %v307 = vpack.c.b16 %v281, %v279
    %v308 = vpack.c.b16 %v284, %v282
    %v309 = vpack.c.b16 %v285, %v283
    %v310 = vpack.c.b16 %v288, %v286
    %v311 = vpack.c.b16 %v289, %v287
    %v312 = vpack.c.b16 %v292, %v290
    %v313 = vpack.c.b16 %v293, %v291
    %v314 = vpack.c.b16 %v296, %v294
    %v315 = vpack.c.b16 %v297, %v295
    %v316 = vpack.c.b16 %v300, %v298
    %v317 = vpack.c.b16 %v301, %v299
    %334 = vmatprep.subr.bf16.mxu0 %v317
    %335 = vmatpush1.bf16.msra.mxu0 %v316
    %336 = vmatprep.subr.bf16.mxu0 %v315
    %337 = vmatpush1.bf16.msra.mxu0 %v314
    %338 = vmatprep.subr.bf16.mxu0 %v313
    %339 = vmatpush1.bf16.msra.mxu0 %v312
    %340 = vmatprep.subr.bf16.mxu0 %v311
    %341 = vmatpush1.bf16.msra.mxu0 %v310
    %342 = vmatprep.subr.bf16.mxu0 %v309
    %343 = vmatpush1.bf16.msra.mxu0 %v308
    %344 = vmatprep.subr.bf16.mxu0 %v307
    %345 = vmatpush1.bf16.msra.mxu0 %v306
    %346 = vmatprep.subr.bf16.mxu0 %v305
    %347 = vmatpush1.bf16.msra.mxu0 %v304
    %348 = vmatprep.subr.bf16.mxu0 %v303
    %349 = vmatpush1.bf16.msra.mxu0 %v302
    %350 = vmatprep.subr.bf16.mxu0 0
    %351 = vmatpush2.bf16.msra.mxu0 0
    %352 = vmatprep.subr.bf16.mxu0 0
    %353 = vmatpush2.bf16.msra.mxu0 0
    %354 = vmatprep.subr.bf16.mxu0 0
    %355 = vmatpush2.bf16.msra.mxu0 0
    %356 = vmatprep.subr.bf16.mxu0 0
    %357 = vmatpush2.bf16.msra.mxu0 0
    %358 = vmatprep.subr.bf16.mxu0 0
    %359 = vmatpush2.bf16.msra.mxu0 0
    %360 = vmatprep.subr.bf16.mxu0 0
    %361 = vmatpush2.bf16.msra.mxu0 0
    %362 = vmatprep.subr.bf16.mxu0 0
    %363 = vmatpush2.bf16.msra.mxu0 0
    %364 = vmatprep.subr.bf16.mxu0 0
    %365 = vmatpush2.bf16.msra.mxu0 0
    %366 = vmatprep.mubr.bf16.mxu0 0
    %367 = vmatmul.mubr.bf16.gmra.mxu0 %v223
    %v368 = vpop.f32.mrf.mxu0
    %v369 = vadd.f32 %v247, %v368
    %v370 = vpop.f32.mrf.mxu0
    %v371 = vadd.f32 %v251, %v370
    %v372 = vpop.f32.mrf.mxu0
    %v373 = vpop.f32.mrf.mxu0
    %374 = vdwg.mxu0
    %v375 = vmul.f32 %v369, 1.442695
    %v376 = vpow.pop %v375
    %v377 = vmul.f32 %v88, %v376
    %v378 = vadd.f32 %v377, %v371
    %v379 = vsel %vm104, %v88, %v378
    %vm380 = vcmp.eq.s32.totalorder %v102, 0
    %v381 = vsel %vm380, %v379, 0.0
    %v382 = vpack.c.bf16 %v381, %v381
    %s383 = scalar_lea.vmem [#allocation5], 128
    %v384 = vld [vmem:[%s383] sm:$0xf]
    %v385 = vld [vmem:[%s383 + $0x4] sm:$0xf]
    %v386 = vld [vmem:[%s383 + $0x8] sm:$0xf]
    %v387 = vld [vmem:[%s383 + $0xc] sm:$0xf]
    %v388 = vld [vmem:[%s383 + $0x10] sm:$0xf]
    %v389 = vld [vmem:[%s383 + $0x14] sm:$0xf]
    %v390 = vld [vmem:[%s383 + $0x18] sm:$0xf]
    %v391 = vld [vmem:[%s383 + $0x1c] sm:$0xf]
    %v392 = vld [vmem:[%s383 + $0x20] sm:$0xf]
    %v393 = vld [vmem:[%s383 + $0x24] sm:$0xf]
    %v394 = vld [vmem:[%s383 + $0x28] sm:$0xf]
    %v395 = vld [vmem:[%s383 + $0x2c] sm:$0xf]
    %v396 = vld [vmem:[%s383 + $0x30] sm:$0xf]
    %v397 = vld [vmem:[%s383 + $0x34] sm:$0xf]
    %v398 = vld [vmem:[%s383 + $0x38] sm:$0xf]
    %v399 = vld [vmem:[%s383 + $0x3c] sm:$0xf]
    %s400 = scalar_lea.vmem [#allocation7], 2
    %v401 = vld [vmem:[%s400] sm:$0x1]
    %v403 = vlaneseq
    %v404 = vshrl.u32 %v403, 7
    %v405 = vsub.s32 0, %v404
    %v406 = vrot.slane %v401, %v405
    %v424 = vunpack.c.l.b16 %v384
    %v425 = vunpack.c.l.b16 %v385
    %v426 = vunpack.c.l.b16 %v386
    %v427 = vunpack.c.l.b16 %v387
    %v428 = vunpack.c.l.b16 %v388
    %v429 = vunpack.c.l.b16 %v389
    %v430 = vunpack.c.l.b16 %v390
    %v431 = vunpack.c.l.b16 %v391
    %v432 = vunpack.c.l.b16 %v392
    %v433 = vunpack.c.l.b16 %v393
    %v434 = vunpack.c.l.b16 %v394
    %v435 = vunpack.c.l.b16 %v395
    %v436 = vunpack.c.l.b16 %v396
    %v437 = vunpack.c.l.b16 %v397
    %v438 = vunpack.c.l.b16 %v398
    %v439 = vunpack.c.l.b16 %v399
    %v440 = vpack.c.b16 %v425, %v424
    %v441 = vpack.c.b16 %v427, %v426
    %v442 = vpack.c.b16 %v429, %v428
    %v443 = vpack.c.b16 %v431, %v430
    %v444 = vpack.c.b16 %v433, %v432
    %v445 = vpack.c.b16 %v435, %v434
    %v446 = vpack.c.b16 %v437, %v436
    %v447 = vpack.c.b16 %v439, %v438
    %456 = vmatprep.subr.bf16.mxu0 0
    %457 = vmatpush1.bf16.msra.mxu0 %v447
    %458 = vmatprep.subr.bf16.mxu0 0
    %459 = vmatpush1.bf16.msra.mxu0 %v446
    %460 = vmatprep.subr.bf16.mxu0 0
    %461 = vmatpush1.bf16.msra.mxu0 %v445
    %462 = vmatprep.subr.bf16.mxu0 0
    %463 = vmatpush1.bf16.msra.mxu0 %v444
    %464 = vmatprep.subr.bf16.mxu0 0
    %465 = vmatpush1.bf16.msra.mxu0 %v443
    %466 = vmatprep.subr.bf16.mxu0 0
    %467 = vmatpush1.bf16.msra.mxu0 %v442
    %468 = vmatprep.subr.bf16.mxu0 0
    %469 = vmatpush1.bf16.msra.mxu0 %v441
    %470 = vmatprep.subr.bf16.mxu0 0
    %471 = vmatpush1.bf16.msra.mxu0 %v440
    %472 = vmatprep.subr.bf16.mxu0 0
    %473 = vmatpush2.bf16.msra.mxu0 0
    %474 = vmatprep.subr.bf16.mxu0 0
    %475 = vmatpush2.bf16.msra.mxu0 0
    %476 = vmatprep.subr.bf16.mxu0 0
    %477 = vmatpush2.bf16.msra.mxu0 0
    %478 = vmatprep.subr.bf16.mxu0 0
    %479 = vmatpush2.bf16.msra.mxu0 0
    %480 = vmatprep.subr.bf16.mxu0 0
    %481 = vmatpush2.bf16.msra.mxu0 0
    %482 = vmatprep.subr.bf16.mxu0 0
    %483 = vmatpush2.bf16.msra.mxu0 0
    %484 = vmatprep.subr.bf16.mxu0 0
    %485 = vmatpush2.bf16.msra.mxu0 0
    %486 = vmatprep.subr.bf16.mxu0 0
    %487 = vmatpush2.bf16.msra.mxu0 0
    %488 = vmatprep.mubr.bf16.mxu0 0
    %489 = vmatmul.mubr.bf16.gmra.mxu0 %v382
    %v490 = vpop.f32.mrf.mxu0
    %v491 = vadd.f32 %v406, %v490
    %v492 = vpop.f32.mrf.mxu0
    %v493 = vpop.f32.mrf.mxu0
    %v494 = vpop.f32.mrf.mxu0
    %495 = vdwg.mxu0
    %v496 = vtanh.pop %v491
    %v497 = vmax.f32 %v491, 0.0
    %v498 = vsel %vm103, %v496, %v497
    %v499 = vpack.c.bf16 %v498, %v498
    %s500 = scalar_lea.vmem [#allocation8], 256
    %v501 = vld [vmem:[%s500] sm:$0xff]
    %v502 = vld [vmem:[%s500 + $0x8] sm:$0xff]
    %v503 = vld [vmem:[%s500 + $0x10] sm:$0xff]
    %v504 = vld [vmem:[%s500 + $0x18] sm:$0xff]
    %v505 = vld [vmem:[%s500 + $0x20] sm:$0xff]
    %v506 = vld [vmem:[%s500 + $0x28] sm:$0xff]
    %v507 = vld [vmem:[%s500 + $0x30] sm:$0xff]
    %v508 = vld [vmem:[%s500 + $0x38] sm:$0xff]
    %v509 = vld [vmem:[%s500 + $0x40] sm:$0xff]
    %v510 = vld [vmem:[%s500 + $0x48] sm:$0xff]
    %v511 = vld [vmem:[%s500 + $0x50] sm:$0xff]
    %v512 = vld [vmem:[%s500 + $0x58] sm:$0xff]
    %v513 = vld [vmem:[%s500 + $0x60] sm:$0xff]
    %v514 = vld [vmem:[%s500 + $0x68] sm:$0xff]
    %v515 = vld [vmem:[%s500 + $0x70] sm:$0xff]
    %v516 = vld [vmem:[%s500 + $0x78] sm:$0xff]
    %s517 = scalar_lea.vmem [#allocation10], 4
    %v518 = vld [vmem:[%s517] sm:$0x3]
    %v520 = vlaneseq
    %v521 = vshrl.u32 %v520, 7
    %v522 = vsub.s32 0, %v521
    %v523 = vrot.slane %v518, %v522
    %v524 = vlaneseq
    %v525 = vshrl.u32 %v524, 7
    %v526 = vsub.s32 1, %v525
    %v527 = vrot.slane %v518, %v526
    %v546 = vunpack.c.l.b16 %v501
    %v547 = vunpack.c.h.b16 %v501
    %v548 = vunpack.c.l.b16 %v502
    %v549 = vunpack.c.h.b16 %v502
    %v550 = vunpack.c.l.b16 %v503
    %v551 = vunpack.c.h.b16 %v503
    %v552 = vunpack.c.l.b16 %v504
    %v553 = vunpack.c.h.b16 %v504
    %v554 = vunpack.c.l.b16 %v505
    %v555 = vunpack.c.h.b16 %v505
    %v556 = vunpack.c.l.b16 %v506
    %v557 = vunpack.c.h.b16 %v506
    %v558 = vunpack.c.l.b16 %v507
    %v559 = vunpack.c.h.b16 %v507
    %v560 = vunpack.c.l.b16 %v508
    %v561 = vunpack.c.h.b16 %v508
    %v562 = vunpack.c.l.b16 %v509
    %v563 = vunpack.c.h.b16 %v509
    %v564 = vunpack.c.l.b16 %v510
    %v565 = vunpack.c.h.b16 %v510
    %v566 = vunpack.c.l.b16 %v511
    %v567 = vunpack.c.h.b16 %v511
    %v568 = vunpack.c.l.b16 %v512
    %v569 = vunpack.c.h.b16 %v512
    %v570 = vunpack.c.l.b16 %v513
    %v571 = vunpack.c.h.b16 %v513
    %v572 = vunpack.c.l.b16 %v514
    %v573 = vunpack.c.h.b16 %v514
    %v574 = vunpack.c.l.b16 %v515
    %v575 = vunpack.c.h.b16 %v515
    %v576 = vunpack.c.l.b16 %v516
    %v577 = vunpack.c.h.b16 %v516
    %v578 = vpack.c.b16 %v548, %v546
    %v579 = vpack.c.b16 %v549, %v547
    %v580 = vpack.c.b16 %v552, %v550
    %v581 = vpack.c.b16 %v553, %v551
    %v582 = vpack.c.b16 %v556, %v554
    %v583 = vpack.c.b16 %v557, %v555
    %v584 = vpack.c.b16 %v560, %v558
    %v585 = vpack.c.b16 %v561, %v559
    %v586 = vpack.c.b16 %v564, %v562
    %v587 = vpack.c.b16 %v565, %v563
    %v588 = vpack.c.b16 %v568, %v566
    %v589 = vpack.c.b16 %v569, %v567
    %v590 = vpack.c.b16 %v572, %v570
    %v591 = vpack.c.b16 %v573, %v571
    %v592 = vpack.c.b16 %v576, %v574
    %v593 = vpack.c.b16 %v577, %v575
    %610 = vmatprep.subr.bf16.mxu0 %v593
    %611 = vmatpush1.bf16.msra.mxu0 %v592
    %612 = vmatprep.subr.bf16.mxu0 %v591
    %613 = vmatpush1.bf16.msra.mxu0 %v590
    %614 = vmatprep.subr.bf16.mxu0 %v589
    %615 = vmatpush1.bf16.msra.mxu0 %v588
    %616 = vmatprep.subr.bf16.mxu0 %v587
    %617 = vmatpush1.bf16.msra.mxu0 %v586
    %618 = vmatprep.subr.bf16.mxu0 %v585
    %619 = vmatpush1.bf16.msra.mxu0 %v584
    %620 = vmatprep.subr.bf16.mxu0 %v583
    %621 = vmatpush1.bf16.msra.mxu0 %v582
    %622 = vmatprep.subr.bf16.mxu0 %v581
    %623 = vmatpush1.bf16.msra.mxu0 %v580
    %624 = vmatprep.subr.bf16.mxu0 %v579
    %625 = vmatpush1.bf16.msra.mxu0 %v578
    %626 = vmatprep.subr.bf16.mxu0 0
    %627 = vmatpush2.bf16.msra.mxu0 0
    %628 = vmatprep.subr.bf16.mxu0 0
    %629 = vmatpush2.bf16.msra.mxu0 0
    %630 = vmatprep.subr.bf16.mxu0 0
    %631 = vmatpush2.bf16.msra.mxu0 0
    %632 = vmatprep.subr.bf16.mxu0 0
    %633 = vmatpush2.bf16.msra.mxu0 0
    %634 = vmatprep.subr.bf16.mxu0 0
    %635 = vmatpush2.bf16.msra.mxu0 0
    %636 = vmatprep.subr.bf16.mxu0 0
    %637 = vmatpush2.bf16.msra.mxu0 0
    %638 = vmatprep.subr.bf16.mxu0 0
    %639 = vmatpush2.bf16.msra.mxu0 0
    %640 = vmatprep.subr.bf16.mxu0 0
    %641 = vmatpush2.bf16.msra.mxu0 0
    %642 = vmatprep.mubr.bf16.mxu0 0
    %643 = vmatmul.mubr.bf16.gmra.mxu0 %v499
    %v644 = vpop.f32.mrf.mxu0
    %v645 = vadd.f32 %v523, %v644
    %v646 = vpop.f32.mrf.mxu0
    %v647 = vadd.f32 %v527, %v646
    %v648 = vpop.f32.mrf.mxu0
    %v649 = vpop.f32.mrf.mxu0
    %650 = vdwg.mxu0
    %v651 = vmul.f32 %v645, 1.442695
    %v652 = vpow.pop %v651
    %v653 = vmul.f32 %v379, %v652
    %v654 = vadd.f32 %v653, %v647
    %v655 = vsel %vm380, %v379, %v654
    %v656 = vsel %vm104, %v655, 0.0
    %v657 = vpack.c.bf16 %v656, %v656
    %s658 = scalar_lea.vmem [#allocation5], 64
    %v659 = vld [vmem:[%s658] sm:$0xf]
    %v660 = vld [vmem:[%s658 + $0x4] sm:$0xf]
    %v661 = vld [vmem:[%s658 + $0x8] sm:$0xf]
    %v662 = vld [vmem:[%s658 + $0xc] sm:$0xf]
    %v663 = vld [vmem:[%s658 + $0x10] sm:$0xf]
    %v664 = vld [vmem:[%s658 + $0x14] sm:$0xf]
    %v665 = vld [vmem:[%s658 + $0x18] sm:$0xf]
    %v666 = vld [vmem:[%s658 + $0x1c] sm:$0xf]
    %v667 = vld [vmem:[%s658 + $0x20] sm:$0xf]
    %v668 = vld [vmem:[%s658 + $0x24] sm:$0xf]
    %v669 = vld [vmem:[%s658 + $0x28] sm:$0xf]
    %v670 = vld [vmem:[%s658 + $0x2c] sm:$0xf]
    %v671 = vld [vmem:[%s658 + $0x30] sm:$0xf]
    %v672 = vld [vmem:[%s658 + $0x34] sm:$0xf]
    %v673 = vld [vmem:[%s658 + $0x38] sm:$0xf]
    %v674 = vld [vmem:[%s658 + $0x3c] sm:$0xf]
    %s675 = scalar_lea.vmem [#allocation7], 1
    %v676 = vld [vmem:[%s675] sm:$0x1]
    %v678 = vlaneseq
    %v679 = vshrl.u32 %v678, 7
    %v680 = vsub.s32 0, %v679
    %v681 = vrot.slane %v676, %v680
    %v699 = vunpack.c.l.b16 %v659
    %v700 = vunpack.c.l.b16 %v660
    %v701 = vunpack.c.l.b16 %v661
    %v702 = vunpack.c.l.b16 %v662
    %v703 = vunpack.c.l.b16 %v663
    %v704 = vunpack.c.l.b16 %v664
    %v705 = vunpack.c.l.b16 %v665
    %v706 = vunpack.c.l.b16 %v666
    %v707 = vunpack.c.l.b16 %v667
    %v708 = vunpack.c.l.b16 %v668
    %v709 = vunpack.c.l.b16 %v669
    %v710 = vunpack.c.l.b16 %v670
    %v711 = vunpack.c.l.b16 %v671
    %v712 = vunpack.c.l.b16 %v672
    %v713 = vunpack.c.l.b16 %v673
    %v714 = vunpack.c.l.b16 %v674
    %v715 = vpack.c.b16 %v700, %v699
    %v716 = vpack.c.b16 %v702, %v701
    %v717 = vpack.c.b16 %v704, %v703
    %v718 = vpack.c.b16 %v706, %v705
    %v719 = vpack.c.b16 %v708, %v707
    %v720 = vpack.c.b16 %v710, %v709
    %v721 = vpack.c.b16 %v712, %v711
    %v722 = vpack.c.b16 %v714, %v713
    %731 = vmatprep.subr.bf16.mxu0 0
    %732 = vmatpush1.bf16.msra.mxu0 %v722
    %733 = vmatprep.subr.bf16.mxu0 0
    %734 = vmatpush1.bf16.msra.mxu0 %v721
    %735 = vmatprep.subr.bf16.mxu0 0
    %736 = vmatpush1.bf16.msra.mxu0 %v720
    %737 = vmatprep.subr.bf16.mxu0 0
    %738 = vmatpush1.bf16.msra.mxu0 %v719
    %739 = vmatprep.subr.bf16.mxu0 0
    %740 = vmatpush1.bf16.msra.mxu0 %v718
    %741 = vmatprep.subr.bf16.mxu0 0
    %742 = vmatpush1.bf16.msra.mxu0 %v717
    %743 = vmatprep.subr.bf16.mxu0 0
    %744 = vmatpush1.bf16.msra.mxu0 %v716
    %745 = vmatprep.subr.bf16.mxu0 0
    %746 = vmatpush1.bf16.msra.mxu0 %v715
    %747 = vmatprep.subr.bf16.mxu0 0
    %748 = vmatpush2.bf16.msra.mxu0 0
    %749 = vmatprep.subr.bf16.mxu0 0
    %750 = vmatpush2.bf16.msra.mxu0 0
    %751 = vmatprep.subr.bf16.mxu0 0
    %752 = vmatpush2.bf16.msra.mxu0 0
    %753 = vmatprep.subr.bf16.mxu0 0
    %754 = vmatpush2.bf16.msra.mxu0 0
    %755 = vmatprep.subr.bf16.mxu0 0
    %756 = vmatpush2.bf16.msra.mxu0 0
    %757 = vmatprep.subr.bf16.mxu0 0
    %758 = vmatpush2.bf16.msra.mxu0 0
    %759 = vmatprep.subr.bf16.mxu0 0
    %760 = vmatpush2.bf16.msra.mxu0 0
    %761 = vmatprep.subr.bf16.mxu0 0
    %762 = vmatpush2.bf16.msra.mxu0 0
    %763 = vmatprep.mubr.bf16.mxu0 0
    %764 = vmatmul.mubr.bf16.gmra.mxu0 %v657
    %v765 = vpop.f32.mrf.mxu0
    %v766 = vadd.f32 %v681, %v765
    %v767 = vpop.f32.mrf.mxu0
    %v768 = vpop.f32.mrf.mxu0
    %v769 = vpop.f32.mrf.mxu0
    %770 = vdwg.mxu0
    %v771 = vtanh.pop %v766
    %v772 = vmax.f32 %v766, 0.0
    %v773 = vsel %vm103, %v771, %v772
    %v774 = vpack.c.bf16 %v773, %v773
    %s775 = scalar_lea.vmem [#allocation8], 128
    %v776 = vld [vmem:[%s775] sm:$0xff]
    %v777 = vld [vmem:[%s775 + $0x8] sm:$0xff]
    %v778 = vld [vmem:[%s775 + $0x10] sm:$0xff]
    %v779 = vld [vmem:[%s775 + $0x18] sm:$0xff]
    %v780 = vld [vmem:[%s775 + $0x20] sm:$0xff]
    %v781 = vld [vmem:[%s775 + $0x28] sm:$0xff]
    %v782 = vld [vmem:[%s775 + $0x30] sm:$0xff]
    %v783 = vld [vmem:[%s775 + $0x38] sm:$0xff]
    %v784 = vld [vmem:[%s775 + $0x40] sm:$0xff]
    %v785 = vld [vmem:[%s775 + $0x48] sm:$0xff]
    %v786 = vld [vmem:[%s775 + $0x50] sm:$0xff]
    %v787 = vld [vmem:[%s775 + $0x58] sm:$0xff]
    %v788 = vld [vmem:[%s775 + $0x60] sm:$0xff]
    %v789 = vld [vmem:[%s775 + $0x68] sm:$0xff]
    %v790 = vld [vmem:[%s775 + $0x70] sm:$0xff]
    %v791 = vld [vmem:[%s775 + $0x78] sm:$0xff]
    %s792 = scalar_lea.vmem [#allocation10], 2
    %v793 = vld [vmem:[%s792] sm:$0x3]
    %v795 = vlaneseq
    %v796 = vshrl.u32 %v795, 7
    %v797 = vsub.s32 0, %v796
    %v798 = vrot.slane %v793, %v797
    %v799 = vlaneseq
    %v800 = vshrl.u32 %v799, 7
    %v801 = vsub.s32 1, %v800
    %v802 = vrot.slane %v793, %v801
    %v821 = vunpack.c.l.b16 %v776
    %v822 = vunpack.c.h.b16 %v776
    %v823 = vunpack.c.l.b16 %v777
    %v824 = vunpack.c.h.b16 %v777
    %v825 = vunpack.c.l.b16 %v778
    %v826 = vunpack.c.h.b16 %v778
    %v827 = vunpack.c.l.b16 %v779
    %v828 = vunpack.c.h.b16 %v779
    %v829 = vunpack.c.l.b16 %v780
    %v830 = vunpack.c.h.b16 %v780
    %v831 = vunpack.c.l.b16 %v781
    %v832 = vunpack.c.h.b16 %v781
    %v833 = vunpack.c.l.b16 %v782
    %v834 = vunpack.c.h.b16 %v782
    %v835 = vunpack.c.l.b16 %v783
    %v836 = vunpack.c.h.b16 %v783
    %v837 = vunpack.c.l.b16 %v784
    %v838 = vunpack.c.h.b16 %v784
    %v839 = vunpack.c.l.b16 %v785
    %v840 = vunpack.c.h.b16 %v785
    %v841 = vunpack.c.l.b16 %v786
    %v842 = vunpack.c.h.b16 %v786
    %v843 = vunpack.c.l.b16 %v787
    %v844 = vunpack.c.h.b16 %v787
    %v845 = vunpack.c.l.b16 %v788
    %v846 = vunpack.c.h.b16 %v788
    %v847 = vunpack.c.l.b16 %v789
    %v848 = vunpack.c.h.b16 %v789
    %v849 = vunpack.c.l.b16 %v790
    %v850 = vunpack.c.h.b16 %v790
    %v851 = vunpack.c.l.b16 %v791
    %v852 = vunpack.c.h.b16 %v791
    %v853 = vpack.c.b16 %v823, %v821
    %v854 = vpack.c.b16 %v824, %v822
    %v855 = vpack.c.b16 %v827, %v825
    %v856 = vpack.c.b16 %v828, %v826
    %v857 = vpack.c.b16 %v831, %v829
    %v858 = vpack.c.b16 %v832, %v830
    %v859 = vpack.c.b16 %v835, %v833
    %v860 = vpack.c.b16 %v836, %v834
    %v861 = vpack.c.b16 %v839, %v837
    %v862 = vpack.c.b16 %v840, %v838
    %v863 = vpack.c.b16 %v843, %v841
    %v864 = vpack.c.b16 %v844, %v842
    %v865 = vpack.c.b16 %v847, %v845
    %v866 = vpack.c.b16 %v848, %v846
    %v867 = vpack.c.b16 %v851, %v849
    %v868 = vpack.c.b16 %v852, %v850
    %885 = vmatprep.subr.bf16.mxu0 %v868
    %886 = vmatpush1.bf16.msra.mxu0 %v867
    %887 = vmatprep.subr.bf16.mxu0 %v866
    %888 = vmatpush1.bf16.msra.mxu0 %v865
    %889 = vmatprep.subr.bf16.mxu0 %v864
    %890 = vmatpush1.bf16.msra.mxu0 %v863
    %891 = vmatprep.subr.bf16.mxu0 %v862
    %892 = vmatpush1.bf16.msra.mxu0 %v861
    %893 = vmatprep.subr.bf16.mxu0 %v860
    %894 = vmatpush1.bf16.msra.mxu0 %v859
    %895 = vmatprep.subr.bf16.mxu0 %v858
    %896 = vmatpush1.bf16.msra.mxu0 %v857
    %897 = vmatprep.subr.bf16.mxu0 %v856
    %898 = vmatpush1.bf16.msra.mxu0 %v855
    %899 = vmatprep.subr.bf16.mxu0 %v854
    %900 = vmatpush1.bf16.msra.mxu0 %v853
    %901 = vmatprep.subr.bf16.mxu0 0
    %902 = vmatpush2.bf16.msra.mxu0 0
    %903 = vmatprep.subr.bf16.mxu0 0
    %904 = vmatpush2.bf16.msra.mxu0 0
    %905 = vmatprep.subr.bf16.mxu0 0
    %906 = vmatpush2.bf16.msra.mxu0 0
    %907 = vmatprep.subr.bf16.mxu0 0
    %908 = vmatpush2.bf16.msra.mxu0 0
    %909 = vmatprep.subr.bf16.mxu0 0
    %910 = vmatpush2.bf16.msra.mxu0 0
    %911 = vmatprep.subr.bf16.mxu0 0
    %912 = vmatpush2.bf16.msra.mxu0 0
    %913 = vmatprep.subr.bf16.mxu0 0
    %914 = vmatpush2.bf16.msra.mxu0 0
    %915 = vmatprep.subr.bf16.mxu0 0
    %916 = vmatpush2.bf16.msra.mxu0 0
    %917 = vmatprep.mubr.bf16.mxu0 0
    %918 = vmatmul.mubr.bf16.gmra.mxu0 %v774
    %v919 = vpop.f32.mrf.mxu0
    %v920 = vadd.f32 %v798, %v919
    %v921 = vpop.f32.mrf.mxu0
    %v922 = vadd.f32 %v802, %v921
    %v923 = vpop.f32.mrf.mxu0
    %v924 = vpop.f32.mrf.mxu0
    %925 = vdwg.mxu0
    %v926 = vmul.f32 %v920, 1.442695
    %v927 = vpow.pop %v926
    %v928 = vmul.f32 %v655, %v927
    %v929 = vadd.f32 %v928, %v922
    %v930 = vsel %vm104, %v655, %v929
    %v931 = vsel %vm380, %v930, 0.0
    %v932 = vpack.c.bf16 %v931, %v931
    %v933 = vld [vmem:[#allocation5] sm:$0xf]
    %v934 = vld [vmem:[#allocation5 + $0x4] sm:$0xf]
    %v935 = vld [vmem:[#allocation5 + $0x8] sm:$0xf]
    %v936 = vld [vmem:[#allocation5 + $0xc] sm:$0xf]
    %v937 = vld [vmem:[#allocation5 + $0x10] sm:$0xf]
    %v938 = vld [vmem:[#allocation5 + $0x14] sm:$0xf]
    %v939 = vld [vmem:[#allocation5 + $0x18] sm:$0xf]
    %v940 = vld [vmem:[#allocation5 + $0x1c] sm:$0xf]
    %v941 = vld [vmem:[#allocation5 + $0x20] sm:$0xf]
    %v942 = vld [vmem:[#allocation5 + $0x24] sm:$0xf]
    %v943 = vld [vmem:[#allocation5 + $0x28] sm:$0xf]
    %v944 = vld [vmem:[#allocation5 + $0x2c] sm:$0xf]
    %v945 = vld [vmem:[#allocation5 + $0x30] sm:$0xf]
    %v946 = vld [vmem:[#allocation5 + $0x34] sm:$0xf]
    %v947 = vld [vmem:[#allocation5 + $0x38] sm:$0xf]
    %v948 = vld [vmem:[#allocation5 + $0x3c] sm:$0xf]
    %v949 = vld [vmem:[#allocation7] sm:$0x1]
    %v951 = vlaneseq
    %v952 = vshrl.u32 %v951, 7
    %v953 = vsub.s32 0, %v952
    %v954 = vrot.slane %v949, %v953
    %v972 = vunpack.c.l.b16 %v933
    %v973 = vunpack.c.l.b16 %v934
    %v974 = vunpack.c.l.b16 %v935
    %v975 = vunpack.c.l.b16 %v936
    %v976 = vunpack.c.l.b16 %v937
    %v977 = vunpack.c.l.b16 %v938
    %v978 = vunpack.c.l.b16 %v939
    %v979 = vunpack.c.l.b16 %v940
    %v980 = vunpack.c.l.b16 %v941
    %v981 = vunpack.c.l.b16 %v942
    %v982 = vunpack.c.l.b16 %v943
    %v983 = vunpack.c.l.b16 %v944
    %v984 = vunpack.c.l.b16 %v945
    %v985 = vunpack.c.l.b16 %v946
    %v986 = vunpack.c.l.b16 %v947
    %v987 = vunpack.c.l.b16 %v948
    %v988 = vpack.c.b16 %v973, %v972
    %v989 = vpack.c.b16 %v975, %v974
    %v990 = vpack.c.b16 %v977, %v976
    %v991 = vpack.c.b16 %v979, %v978
    %v992 = vpack.c.b16 %v981, %v980
    %v993 = vpack.c.b16 %v983, %v982
    %v994 = vpack.c.b16 %v985, %v984
    %v995 = vpack.c.b16 %v987, %v986
    %1004 = vmatprep.subr.bf16.mxu0 0
    %1005 = vmatpush1.bf16.msra.mxu0 %v995
    %1006 = vmatprep.subr.bf16.mxu0 0
    %1007 = vmatpush1.bf16.msra.mxu0 %v994
    %1008 = vmatprep.subr.bf16.mxu0 0
    %1009 = vmatpush1.bf16.msra.mxu0 %v993
    %1010 = vmatprep.subr.bf16.mxu0 0
    %1011 = vmatpush1.bf16.msra.mxu0 %v992
    %1012 = vmatprep.subr.bf16.mxu0 0
    %1013 = vmatpush1.bf16.msra.mxu0 %v991
    %1014 = vmatprep.subr.bf16.mxu0 0
    %1015 = vmatpush1.bf16.msra.mxu0 %v990
    %1016 = vmatprep.subr.bf16.mxu0 0
    %1017 = vmatpush1.bf16.msra.mxu0 %v989
    %1018 = vmatprep.subr.bf16.mxu0 0
    %1019 = vmatpush1.bf16.msra.mxu0 %v988
    %1020 = vmatprep.subr.bf16.mxu0 0
    %1021 = vmatpush2.bf16.msra.mxu0 0
    %1022 = vmatprep.subr.bf16.mxu0 0
    %1023 = vmatpush2.bf16.msra.mxu0 0
    %1024 = vmatprep.subr.bf16.mxu0 0
    %1025 = vmatpush2.bf16.msra.mxu0 0
    %1026 = vmatprep.subr.bf16.mxu0 0
    %1027 = vmatpush2.bf16.msra.mxu0 0
    %1028 = vmatprep.subr.bf16.mxu0 0
    %1029 = vmatpush2.bf16.msra.mxu0 0
    %1030 = vmatprep.subr.bf16.mxu0 0
    %1031 = vmatpush2.bf16.msra.mxu0 0
    %1032 = vmatprep.subr.bf16.mxu0 0
    %1033 = vmatpush2.bf16.msra.mxu0 0
    %1034 = vmatprep.subr.bf16.mxu0 0
    %1035 = vmatpush2.bf16.msra.mxu0 0
    %1036 = vmatprep.mubr.bf16.mxu0 0
    %1037 = vmatmul.mubr.bf16.gmra.mxu0 %v932
    %v1038 = vpop.f32.mrf.mxu0
    %v1039 = vadd.f32 %v954, %v1038
    %v1040 = vpop.f32.mrf.mxu0
    %v1041 = vpop.f32.mrf.mxu0
    %v1042 = vpop.f32.mrf.mxu0
    %1043 = vdwg.mxu0
    %v1044 = vtanh.pop %v1039
    %v1045 = vmax.f32 %v1039, 0.0
    %v1046 = vsel %vm103, %v1044, %v1045
    %v1047 = vpack.c.bf16 %v1046, %v1046
    %v1048 = vld [vmem:[#allocation8] sm:$0xff]
    %v1049 = vld [vmem:[#allocation8 + $0x8] sm:$0xff]
    %v1050 = vld [vmem:[#allocation8 + $0x10] sm:$0xff]
    %v1051 = vld [vmem:[#allocation8 + $0x18] sm:$0xff]
    %v1052 = vld [vmem:[#allocation8 + $0x20] sm:$0xff]
    %v1053 = vld [vmem:[#allocation8 + $0x28] sm:$0xff]
    %v1054 = vld [vmem:[#allocation8 + $0x30] sm:$0xff]
    %v1055 = vld [vmem:[#allocation8 + $0x38] sm:$0xff]
    %v1056 = vld [vmem:[#allocation8 + $0x40] sm:$0xff]
    %v1057 = vld [vmem:[#allocation8 + $0x48] sm:$0xff]
    %v1058 = vld [vmem:[#allocation8 + $0x50] sm:$0xff]
    %v1059 = vld [vmem:[#allocation8 + $0x58] sm:$0xff]
    %v1060 = vld [vmem:[#allocation8 + $0x60] sm:$0xff]
    %v1061 = vld [vmem:[#allocation8 + $0x68] sm:$0xff]
    %v1062 = vld [vmem:[#allocation8 + $0x70] sm:$0xff]
    %v1063 = vld [vmem:[#allocation8 + $0x78] sm:$0xff]
    %v1064 = vld [vmem:[#allocation10] sm:$0x3]
    %v1066 = vlaneseq
    %v1067 = vshrl.u32 %v1066, 7
    %v1068 = vsub.s32 0, %v1067
    %v1069 = vrot.slane %v1064, %v1068
    %v1070 = vlaneseq
    %v1071 = vshrl.u32 %v1070, 7
    %v1072 = vsub.s32 1, %v1071
    %v1073 = vrot.slane %v1064, %v1072
    %v1092 = vunpack.c.l.b16 %v1048
    %v1093 = vunpack.c.h.b16 %v1048
    %v1094 = vunpack.c.l.b16 %v1049
    %v1095 = vunpack.c.h.b16 %v1049
    %v1096 = vunpack.c.l.b16 %v1050
    %v1097 = vunpack.c.h.b16 %v1050
    %v1098 = vunpack.c.l.b16 %v1051
    %v1099 = vunpack.c.h.b16 %v1051
    %v1100 = vunpack.c.l.b16 %v1052
    %v1101 = vunpack.c.h.b16 %v1052
    %v1102 = vunpack.c.l.b16 %v1053
    %v1103 = vunpack.c.h.b16 %v1053
    %v1104 = vunpack.c.l.b16 %v1054
    %v1105 = vunpack.c.h.b16 %v1054
    %v1106 = vunpack.c.l.b16 %v1055
    %v1107 = vunpack.c.h.b16 %v1055
    %v1108 = vunpack.c.l.b16 %v1056
    %v1109 = vunpack.c.h.b16 %v1056
    %v1110 = vunpack.c.l.b16 %v1057
    %v1111 = vunpack.c.h.b16 %v1057
    %v1112 = vunpack.c.l.b16 %v1058
    %v1113 = vunpack.c.h.b16 %v1058
    %v1114 = vunpack.c.l.b16 %v1059
    %v1115 = vunpack.c.h.b16 %v1059
    %v1116 = vunpack.c.l.b16 %v1060
    %v1117 = vunpack.c.h.b16 %v1060
    %v1118 = vunpack.c.l.b16 %v1061
    %v1119 = vunpack.c.h.b16 %v1061
    %v1120 = vunpack.c.l.b16 %v1062
    %v1121 = vunpack.c.h.b16 %v1062
    %v1122 = vunpack.c.l.b16 %v1063
    %v1123 = vunpack.c.h.b16 %v1063
    %v1124 = vpack.c.b16 %v1094, %v1092
    %v1125 = vpack.c.b16 %v1095, %v1093
    %v1126 = vpack.c.b16 %v1098, %v1096
    %v1127 = vpack.c.b16 %v1099, %v1097
    %v1128 = vpack.c.b16 %v1102, %v1100
    %v1129 = vpack.c.b16 %v1103, %v1101
    %v1130 = vpack.c.b16 %v1106, %v1104
    %v1131 = vpack.c.b16 %v1107, %v1105
    %v1132 = vpack.c.b16 %v1110, %v1108
    %v1133 = vpack.c.b16 %v1111, %v1109
    %v1134 = vpack.c.b16 %v1114, %v1112
    %v1135 = vpack.c.b16 %v1115, %v1113
    %v1136 = vpack.c.b16 %v1118, %v1116
    %v1137 = vpack.c.b16 %v1119, %v1117
    %v1138 = vpack.c.b16 %v1122, %v1120
    %v1139 = vpack.c.b16 %v1123, %v1121
    %1156 = vmatprep.subr.bf16.mxu0 %v1139
    %1157 = vmatpush1.bf16.msra.mxu0 %v1138
    %1158 = vmatprep.subr.bf16.mxu0 %v1137
    %1159 = vmatpush1.bf16.msra.mxu0 %v1136
    %1160 = vmatprep.subr.bf16.mxu0 %v1135
    %1161 = vmatpush1.bf16.msra.mxu0 %v1134
    %1162 = vmatprep.subr.bf16.mxu0 %v1133
    %1163 = vmatpush1.bf16.msra.mxu0 %v1132
    %1164 = vmatprep.subr.bf16.mxu0 %v1131
    %1165 = vmatpush1.bf16.msra.mxu0 %v1130
    %1166 = vmatprep.subr.bf16.mxu0 %v1129
    %1167 = vmatpush1.bf16.msra.mxu0 %v1128
    %1168 = vmatprep.subr.bf16.mxu0 %v1127
    %1169 = vmatpush1.bf16.msra.mxu0 %v1126
    %1170 = vmatprep.subr.bf16.mxu0 %v1125
    %1171 = vmatpush1.bf16.msra.mxu0 %v1124
    %1172 = vmatprep.subr.bf16.mxu0 0
    %1173 = vmatpush2.bf16.msra.mxu0 0
    %1174 = vmatprep.subr.bf16.mxu0 0
    %1175 = vmatpush2.bf16.msra.mxu0 0
    %1176 = vmatprep.subr.bf16.mxu0 0
    %1177 = vmatpush2.bf16.msra.mxu0 0
    %1178 = vmatprep.subr.bf16.mxu0 0
    %1179 = vmatpush2.bf16.msra.mxu0 0
    %1180 = vmatprep.subr.bf16.mxu0 0
    %1181 = vmatpush2.bf16.msra.mxu0 0
    %1182 = vmatprep.subr.bf16.mxu0 0
    %1183 = vmatpush2.bf16.msra.mxu0 0
    %1184 = vmatprep.subr.bf16.mxu0 0
    %1185 = vmatpush2.bf16.msra.mxu0 0
    %1186 = vmatprep.subr.bf16.mxu0 0
    %1187 = vmatpush2.bf16.msra.mxu0 0
    %1188 = vmatprep.mubr.bf16.mxu0 0
    %1189 = vmatmul.mubr.bf16.gmra.mxu0 %v1047
    %v1190 = vpop.f32.mrf.mxu0
    %v1191 = vadd.f32 %v1069, %v1190
    %v1192 = vpop.f32.mrf.mxu0
    %v1193 = vadd.f32 %v1073, %v1192
    %v1194 = vpop.f32.mrf.mxu0
    %v1195 = vpop.f32.mrf.mxu0
    %1196 = vdwg.mxu0
    %v1197 = vmul.f32 %v1191, 1.442695
    %v1198 = vpow.pop %v1197
    %v1199 = vmul.f32 %v930, %v1198
    %v1200 = vadd.f32 %v1199, %v1193
    %v1201 = vsel %vm380, %v930, %v1200
    %v1202 = vxor.u32 %v1201, 2147483648
    %v1203 = vmul.f32 %v1202, 1.442695
    %v1204 = vpow.pop %v1203
    %v1205 = vadd.f32 %v1204, 1.0
    %v1206 = vrcp.pop %v1205
    %v1207 = vmul.f32 1.0, %v1206
    %v1208 = vsub.f32 %v1207, 1e-06
    %v1209 = vrcp.pop 0.999998
    %v1210 = vmul.f32 %v1208, %v1209
    %1211 = vst [vmem:[#allocation11] sm:$0xff] %v1210
    // Predicated region
    $region42: #{tpu_custom_call.1} parent=1 // pred_check
      _
    $region43: #{tpu_custom_call.1} parent=1 // pred_check_branch
      %1213 = sbr.rel (0) target = $region45
    $region44: #{tpu_custom_call.1} parent=1 // pred_region
      %s1215 = ssub.s32 128, 128
      %1216 = vsyncadd [#allocation4], %s1215
      %s1218 = sshll.u32 [#allocation11], 4
      %s1219 = int_to_ptr.vmem [resolvable:$true] %s1218
      %1221 = dma.vmem_to_hbm [thread:$0]  %s1219, 128, %s5, [#allocation4]
    $region45: #{tpu_custom_call.1} parent=1 // pred_fallthru
      _
    // Predicated region
    $region46: #{tpu_custom_call.1} parent=1 // pred_check
      _
    $region47: #{tpu_custom_call.1} parent=1 // pred_check_branch
      %1223 = sbr.rel (0) target = $region49
    $region48: #{tpu_custom_call.1} parent=1 // pred_region
      %1224 = dma.done [#allocation4], 128
    $region49: #{tpu_custom_call.1} parent=1 // pred_fallthru
      _
    %1225 = vsyncpa [#allocation3], 1
    %1226 = vsyncpa [#allocation6], 1
    %1227 = vsyncpa [#allocation9], 1
    %1228 = vsyncpa [#allocation4], 1

</llo_original>
